<compile_context>
chip_gen: v7x
topology: tpu7x:2x2x1
jax: 0.10.0
libtpu: 0.0.40
codegen_flags: <defaults>
</compile_context>

<pallas_src>
import jax
import jax.numpy as jnp
from jax import lax
from jax.experimental import pallas as pl
from jax.experimental.pallas import tpu as pltpu

MARGIN = 1.0
EPS_PD = 1e-6      # eps used by F.pairwise_distance (added to the difference)
EPS_CNT = 1e-16    # eps used in the hard-triplet count / normalization


def hard_triplet_kernel(labels_ref, attr_ref, emb_ref, out_ref):
    # attr_ref, emb_ref : (D, B*C) f32 in VMEM (lane-dense)
    # labels_ref        : (B,)  int32 in SMEM
    # out_ref           : (1, 1) f32 in SMEM
    d, bc = attr_ref.shape
    b = labels_ref.shape[0]
    c = bc // b

    # relations (flat): rel[k] = || emb[:,k] - attr[:,k] + eps ||_2, k = i*C + j
    diff = emb_ref[...] - attr_ref[...] + EPS_PD                   # (D, BC), all lanes live
    rel = jnp.sqrt(jnp.sum(diff * diff, axis=0, keepdims=True))    # (1, BC)

    # Boolean positive mask in flat coordinates, built as a log2(B)-deep OR
    # tree: mask[k] = (k == i*C + labels[i]) for i = k // C.
    flat_idx = lax.broadcasted_iota(jnp.int32, (1, bc), 1)
    masks = [flat_idx == (i * c + labels_ref[i]) for i in range(b)]
    while len(masks) > 1:
        nxt = [jnp.logical_or(masks[j], masks[j + 1])
               for j in range(0, len(masks) - 1, 2)]
        if len(masks) % 2 == 1:
            nxt.append(masks[-1])
        masks = nxt
    mask = masks[0]                                                # (1, BC) bool

    # Per-class (column of the (B, C) view) reduction over the batch axis,
    # done directly in flat layout with wraparound lane rolls of period C.
    # Log-tree version: shifts c, 2c, 4c, ... double the covered row span each
    # step; once coverage >= B every lane holds its column's full reduction
    # (duplicate rows are harmless: max/min are idempotent).
    def col_reduce(x, op):
        acc = x
        cov = 1
        shift = c
        while cov < b:
            acc = op(acc, pltpu.roll(acc, shift=shift, axis=1))
            cov *= 2
            shift *= 2
        return acc

    # Fused max reductions: one tree over a (2, BC) stack of [valid_pos; rel].
    valid_pos = jnp.where(mask, rel, 0.0)                          # rel * mask_pos
    max_stack = col_reduce(jnp.concatenate([valid_pos, rel], axis=0),
                           jnp.maximum)                            # (2, BC)
    hardest_pos = max_stack[0:1, :]                                # col-replicated
    max_neg = max_stack[1:2, :]                                    # max over rows per column

    anchor_neg = rel + jnp.where(mask, max_neg, 0.0)               # rel + max_neg * mask_pos
    hardest_neg = col_reduce(anchor_neg, jnp.minimum)              # (1, BC), col-replicated

    loss_all = jnp.maximum(hardest_pos - hardest_neg + MARGIN, 0.0)

    # Each column's value is replicated B times (exact: max/min are exact and
    # order-independent); keep exactly one replica per class, and fuse the
    # loss-sum and hard-count reductions into a single (2, BC) -> (2, 1) sum.
    one_per_class = flat_idx < c
    loss_row = jnp.where(one_per_class, loss_all, 0.0)
    cnt_row = jnp.where(jnp.logical_and(one_per_class, loss_all > EPS_CNT),
                        1.0, 0.0)
    sums = jnp.sum(jnp.concatenate([loss_row, cnt_row], axis=0),
                   axis=1, keepdims=True)                          # (2, 1)

    out_ref[0, 0] = sums[0, 0] / (sums[1, 0] + EPS_CNT)


def hard_triplet_loss(attributes, embeddings, labels):
    """attributes, embeddings: (B*C, D) f32; labels: (B,) int32 in [0, C)."""
    b = labels.shape[0]
    n, d = attributes.shape
    assert embeddings.shape == (n, d)
    assert n % b == 0, (
        f"N={n} must equal B*C for B={b}: the flat roll-period reduction "
        f"assumes relations reshape exactly to (B, C).")

    # Layout plumbing only: lane-dense (D, B*C) slabs for the kernel.  At
    # production sizes prefer emitting (D, N) at the producer (the XLA
    # transpose here is an extra HBM read+write of both tensors).
    attr_t = attributes.astype(jnp.float32).T        # (D, N)
    emb_t = embeddings.astype(jnp.float32).T         # (D, N)
    labels1 = labels.astype(jnp.int32).reshape(b)    # flat (B,) SMEM scalars

    cost = pl.CostEstimate(
        flops=5 * n * d + 30 * n,       # diff/square/reduce + masking/reductions
        transcendentals=n,              # sqrt per relation entry
        bytes_accessed=2 * n * d * 4 + b * 4 + 4,
    )

    out = pl.pallas_call(
        hard_triplet_kernel,
        out_shape=jax.ShapeDtypeStruct((1, 1), jnp.float32),
        in_specs=[
            pl.BlockSpec(memory_space=pltpu.MemorySpace.SMEM),  # labels (B,)
            pl.BlockSpec(memory_space=pltpu.MemorySpace.VMEM),  # attributes (D, N)
            pl.BlockSpec(memory_space=pltpu.MemorySpace.VMEM),  # embeddings (D, N)
        ],
        out_specs=pl.BlockSpec(memory_space=pltpu.MemorySpace.SMEM),
        cost_estimate=cost,
    )(labels1, attr_t, emb_t)
    return out[0, 0]


def _reference_loss(attributes, embeddings, labels):
    """Pure-JAX replica of the PyTorch forward for verification."""
    b = labels.shape[0]
    n, d = attributes.shape
    c = n // b
    diff = embeddings - attributes + EPS_PD
    rel = jnp.sqrt(jnp.sum(diff * diff, axis=-1)).reshape(b, c)
    mask_pos = jax.nn.one_hot(labels, c, dtype=jnp.float32)
    hardest_pos = jnp.max(rel * mask_pos, axis=0, keepdims=True)
    max_neg = jnp.max(rel, axis=0, keepdims=True)
    anchor_neg = rel + max_neg * mask_pos
    hardest_neg = jnp.min(anchor_neg, axis=0, keepdims=True)
    loss_all = jnp.maximum(hardest_pos - hardest_neg + MARGIN, 0.0)
    num_hard = jnp.sum((loss_all > EPS_CNT).astype(jnp.float32))
    return jnp.sum(loss_all) / (num_hard + EPS_CNT)


if __name__ == "__main__":
    B, C, D = 8, 16, 32   # batch, num classes (relation columns), embed dim
    key = jax.random.PRNGKey(0)
    k1, k2, k3 = jax.random.split(key, 3)
    attributes = jax.random.normal(k1, (B * C, D), dtype=jnp.float32)
    embeddings = jax.random.normal(k2, (B * C, D), dtype=jnp.float32)
    labels = jax.random.randint(k3, (B,), 0, C, dtype=jnp.int32)

    loss = hard_triplet_loss(attributes, embeddings, labels)
    jax.block_until_ready(loss)

    ref = _reference_loss(attributes, embeddings, labels)
    assert jnp.allclose(loss, ref, atol=1e-5, rtol=1e-5), (loss, ref)

    print("KERNEL_OK")
</pallas_src>

<mosaic_0001>
module attributes {stable_mosaic.version = 11 : i64} {
  func.func @hard_triplet_kernel(%arg0: memref<8xi32, #tpu.memory_space<smem>>, %arg1: memref<32x128xf32, #tpu.memory_space<vmem>>, %arg2: memref<32x128xf32, #tpu.memory_space<vmem>>, %arg3: memref<1x1xf32, #tpu.memory_space<smem>>) attributes {dimension_semantics = [], scalar_prefetch = 0 : i64, scratch_operands = 0 : i64, tpu.core_type = #tpu.core_type<tc>} {
    %c0 = arith.constant 0 : index
    %c0_0 = arith.constant 0 : index
    %0 = vector.load %arg2[%c0, %c0_0] : memref<32x128xf32, #tpu.memory_space<vmem>>, vector<32x128xf32>
    %c0_1 = arith.constant 0 : index
    %c0_2 = arith.constant 0 : index
    %1 = vector.load %arg1[%c0_1, %c0_2] : memref<32x128xf32, #tpu.memory_space<vmem>>, vector<32x128xf32>
    %2 = arith.subf %0, %1 : vector<32x128xf32>
    %cst = arith.constant 9.99999997E-7 : f32
    %3 = vector.broadcast %cst : f32 to vector<32x128xf32>
    %4 = arith.addf %2, %3 : vector<32x128xf32>
    %5 = arith.mulf %4, %4 : vector<32x128xf32>
    %cst_3 = arith.constant dense<0.000000e+00> : vector<128xf32>
    %6 = vector.multi_reduction <add>, %5, %cst_3 [0] : vector<32x128xf32> to vector<128xf32>
    %7 = vector.shape_cast %6 : vector<128xf32> to vector<1x128xf32>
    %8 = math.sqrt %7 : vector<1x128xf32>
    %9 = tpu.iota {dimensions = array<i32: 1>} : vector<1x128xi32>
    %c0_4 = arith.constant 0 : index
    %10 = memref.load %arg0[%c0_4] : memref<8xi32, #tpu.memory_space<smem>>
    %c0_i32 = arith.constant 0 : i32
    %11 = arith.addi %c0_i32, %10 : i32
    %12 = vector.broadcast %11 : i32 to vector<1x128xi32>
    %13 = arith.cmpi eq, %9, %12 : vector<1x128xi32>
    %c1 = arith.constant 1 : index
    %14 = memref.load %arg0[%c1] : memref<8xi32, #tpu.memory_space<smem>>
    %c16_i32 = arith.constant 16 : i32
    %15 = arith.addi %c16_i32, %14 : i32
    %16 = vector.broadcast %15 : i32 to vector<1x128xi32>
    %17 = arith.cmpi eq, %9, %16 : vector<1x128xi32>
    %c2 = arith.constant 2 : index
    %18 = memref.load %arg0[%c2] : memref<8xi32, #tpu.memory_space<smem>>
    %c32_i32 = arith.constant 32 : i32
    %19 = arith.addi %c32_i32, %18 : i32
    %20 = vector.broadcast %19 : i32 to vector<1x128xi32>
    %21 = arith.cmpi eq, %9, %20 : vector<1x128xi32>
    %c3 = arith.constant 3 : index
    %22 = memref.load %arg0[%c3] : memref<8xi32, #tpu.memory_space<smem>>
    %c48_i32 = arith.constant 48 : i32
    %23 = arith.addi %c48_i32, %22 : i32
    %24 = vector.broadcast %23 : i32 to vector<1x128xi32>
    %25 = arith.cmpi eq, %9, %24 : vector<1x128xi32>
    %c4 = arith.constant 4 : index
    %26 = memref.load %arg0[%c4] : memref<8xi32, #tpu.memory_space<smem>>
    %c64_i32 = arith.constant 64 : i32
    %27 = arith.addi %c64_i32, %26 : i32
    %28 = vector.broadcast %27 : i32 to vector<1x128xi32>
    %29 = arith.cmpi eq, %9, %28 : vector<1x128xi32>
    %c5 = arith.constant 5 : index
    %30 = memref.load %arg0[%c5] : memref<8xi32, #tpu.memory_space<smem>>
    %c80_i32 = arith.constant 80 : i32
    %31 = arith.addi %c80_i32, %30 : i32
    %32 = vector.broadcast %31 : i32 to vector<1x128xi32>
    %33 = arith.cmpi eq, %9, %32 : vector<1x128xi32>
    %c6 = arith.constant 6 : index
    %34 = memref.load %arg0[%c6] : memref<8xi32, #tpu.memory_space<smem>>
    %c96_i32 = arith.constant 96 : i32
    %35 = arith.addi %c96_i32, %34 : i32
    %36 = vector.broadcast %35 : i32 to vector<1x128xi32>
    %37 = arith.cmpi eq, %9, %36 : vector<1x128xi32>
    %c7 = arith.constant 7 : index
    %38 = memref.load %arg0[%c7] : memref<8xi32, #tpu.memory_space<smem>>
    %c112_i32 = arith.constant 112 : i32
    %39 = arith.addi %c112_i32, %38 : i32
    %40 = vector.broadcast %39 : i32 to vector<1x128xi32>
    %41 = arith.cmpi eq, %9, %40 : vector<1x128xi32>
    %42 = arith.ori %13, %17 : vector<1x128xi1>
    %43 = arith.ori %21, %25 : vector<1x128xi1>
    %44 = arith.ori %29, %33 : vector<1x128xi1>
    %45 = arith.ori %37, %41 : vector<1x128xi1>
    %46 = arith.ori %42, %43 : vector<1x128xi1>
    %47 = arith.ori %44, %45 : vector<1x128xi1>
    %48 = arith.ori %46, %47 : vector<1x128xi1>
    %cst_5 = arith.constant 0.000000e+00 : f32
    %49 = vector.broadcast %cst_5 : f32 to vector<1x128xf32>
    %50 = arith.select %48, %8, %49 : vector<1x128xi1>, vector<1x128xf32>
    %51 = tpu.concatenate %50, %8 in 0 : vector<1x128xf32>, vector<1x128xf32> -> vector<2x128xf32>
    %c16_i32_6 = arith.constant 16 : i32
    %52 = tpu.dynamic_rotate %51 by %c16_i32_6 dim 1 : vector<2x128xf32>, i32 -> vector<2x128xf32>
    %53 = arith.maximumf %51, %52 : vector<2x128xf32>
    %c32_i32_7 = arith.constant 32 : i32
    %54 = tpu.dynamic_rotate %53 by %c32_i32_7 dim 1 : vector<2x128xf32>, i32 -> vector<2x128xf32>
    %55 = arith.maximumf %53, %54 : vector<2x128xf32>
    %c64_i32_8 = arith.constant 64 : i32
    %56 = tpu.dynamic_rotate %55 by %c64_i32_8 dim 1 : vector<2x128xf32>, i32 -> vector<2x128xf32>
    %57 = arith.maximumf %55, %56 : vector<2x128xf32>
    %58 = vector.extract_strided_slice %57 {offsets = [0, 0], sizes = [1, 128], strides = [1, 1]} : vector<2x128xf32> to vector<1x128xf32>
    %59 = vector.extract_strided_slice %57 {offsets = [1, 0], sizes = [1, 128], strides = [1, 1]} : vector<2x128xf32> to vector<1x128xf32>
    %cst_9 = arith.constant 0.000000e+00 : f32
    %60 = vector.broadcast %cst_9 : f32 to vector<1x128xf32>
    %61 = arith.select %48, %59, %60 : vector<1x128xi1>, vector<1x128xf32>
    %62 = arith.addf %8, %61 : vector<1x128xf32>
    %c16_i32_10 = arith.constant 16 : i32
    %63 = tpu.dynamic_rotate %62 by %c16_i32_10 dim 1 : vector<1x128xf32>, i32 -> vector<1x128xf32>
    %64 = arith.minimumf %62, %63 : vector<1x128xf32>
    %c32_i32_11 = arith.constant 32 : i32
    %65 = tpu.dynamic_rotate %64 by %c32_i32_11 dim 1 : vector<1x128xf32>, i32 -> vector<1x128xf32>
    %66 = arith.minimumf %64, %65 : vector<1x128xf32>
    %c64_i32_12 = arith.constant 64 : i32
    %67 = tpu.dynamic_rotate %66 by %c64_i32_12 dim 1 : vector<1x128xf32>, i32 -> vector<1x128xf32>
    %68 = arith.minimumf %66, %67 : vector<1x128xf32>
    %69 = arith.subf %58, %68 : vector<1x128xf32>
    %cst_13 = arith.constant 1.000000e+00 : f32
    %70 = vector.broadcast %cst_13 : f32 to vector<1x128xf32>
    %71 = arith.addf %69, %70 : vector<1x128xf32>
    %cst_14 = arith.constant 0.000000e+00 : f32
    %72 = vector.broadcast %cst_14 : f32 to vector<1x128xf32>
    %73 = arith.maximumf %71, %72 : vector<1x128xf32>
    %c16_i32_15 = arith.constant 16 : i32
    %74 = vector.broadcast %c16_i32_15 : i32 to vector<1x128xi32>
    %75 = arith.cmpi slt, %9, %74 : vector<1x128xi32>
    %cst_16 = arith.constant 0.000000e+00 : f32
    %76 = vector.broadcast %cst_16 : f32 to vector<1x128xf32>
    %77 = arith.select %75, %73, %76 : vector<1x128xi1>, vector<1x128xf32>
    %cst_17 = arith.constant 1.000000e-16 : f32
    %78 = vector.broadcast %cst_17 : f32 to vector<1x128xf32>
    %79 = arith.cmpf ogt, %73, %78 : vector<1x128xf32>
    %80 = arith.andi %75, %79 : vector<1x128xi1>
    %cst_18 = arith.constant 1.000000e+00 : f32
    %cst_19 = arith.constant 0.000000e+00 : f32
    %81 = vector.broadcast %cst_18 : f32 to vector<1x128xf32>
    %82 = vector.broadcast %cst_19 : f32 to vector<1x128xf32>
    %83 = arith.select %80, %81, %82 : vector<1x128xi1>, vector<1x128xf32>
    %84 = tpu.concatenate %77, %83 in 0 : vector<1x128xf32>, vector<1x128xf32> -> vector<2x128xf32>
    %cst_20 = arith.constant dense<0.000000e+00> : vector<2xf32>
    %85 = vector.multi_reduction <add>, %84, %cst_20 [1] : vector<2x128xf32> to vector<2xf32>
    %86 = vector.shape_cast %85 : vector<2xf32> to vector<2x1xf32>
    %87 = vector.extract_strided_slice %86 {offsets = [0, 0], sizes = [1, 1], strides = [1, 1]} : vector<2x1xf32> to vector<1x1xf32>
    %88 = vector.extract %87[0, 0] : f32 from vector<1x1xf32>
    %89 = vector.extract_strided_slice %86 {offsets = [1, 0], sizes = [1, 1], strides = [1, 1]} : vector<2x1xf32> to vector<1x1xf32>
    %90 = vector.extract %89[0, 0] : f32 from vector<1x1xf32>
    %cst_21 = arith.constant 1.000000e-16 : f32
    %91 = arith.addf %90, %cst_21 : f32
    %92 = arith.divf %88, %91 : f32
    %c0_22 = arith.constant 0 : index
    %c0_23 = arith.constant 0 : index
    %93 = memref.load %arg3[%c0_22, %c0_23] : memref<1x1xf32, #tpu.memory_space<smem>>
    memref.store %92, %arg3[%c0_22, %c0_23] : memref<1x1xf32, #tpu.memory_space<smem>>
    return
  }
}

</mosaic_0001>

<llo_original>
// kernel: tpu_custom_call.1
$region0: #{tpu_custom_call.1}
  #allocation0 [shape = 'u32[]', space=smem, size = 0x4, offset = 0x4, fixed_abs, tag = 'smem constant byte address 0x4 - core index']
  #allocation1 [shape = 'u32[144,128]{1,0:T(1,128)}', space=vmem, size = 0x12000, scoped, tag = 'internal scratch']
  %s0 = inlined_call_operand.hbm [shape: s32[8], index: 0, kind: input, shape index: {}]
  %s1 = inlined_call_operand.hbm [shape: f32[32,128], index: 1, kind: input, shape index: {}]
  %s2 = inlined_call_operand.hbm [shape: f32[32,128], index: 2, kind: input, shape index: {}]
  %s3 = inlined_call_operand.hbm [shape: f32[1,1], index: 3, kind: output, shape index: {}]
  %s4 = sld [smem:[#allocation0]]
  $region34: #{tpu_custom_call.1} parent=0
    _
  %s6 = ssub.s32 1, %s4
  %s7 = scalar_select 0, %s6, %s4
  $region1: #{tpu_custom_call.1} parent=0
    #allocation2 [shape = 'u8[512]{0}', space=smem, size = 0x200, scoped, tag = 'input window, operand 0, single buffered']
    #allocation3 [shape = 's32[1]{0}', space=sflag, size = 0x4, scoped, tag = 'scoped memory for tpu_custom_call.1']
    #allocation4 [shape = 's32[1]{0}', space=sflag, size = 0x4, scoped, tag = 'scoped memory for tpu_custom_call.1']
    #allocation5 [shape = 's32[1]{0}', space=sflag, size = 0x4, scoped, tag = 'scoped memory for tpu_custom_call.1']
    #allocation6 [shape = 'u8[16384]{0}', space=vmem, size = 0x4000, scoped, tag = 'input window, operand 1, single buffered']
    #allocation7 [shape = 'u8[16384]{0}', space=vmem, size = 0x4000, scoped, tag = 'input window, operand 2, single buffered']
    #allocation8 [shape = 's32[1]{0}', space=sflag, size = 0x4, scoped, tag = 'scoped memory for tpu_custom_call.1']
    #allocation9 [shape = 'u8[512]{0}', space=smem, size = 0x200, scoped, tag = 'output window, operand 0, single buffered']
    %8 = vsyncpa [#allocation4], 0
    %9 = vsyncpa [#allocation3], 0
    %10 = vsyncpa [#allocation8], 0
    %11 = vsyncpa [#allocation5], 0
    // Predicated region
    $region2: #{tpu_custom_call.1} parent=1 // pred_check
      _
    $region3: #{tpu_custom_call.1} parent=1 // pred_check_branch
      %13 = sbr.rel (0) target = $region5
    $region4: #{tpu_custom_call.1} parent=1 // pred_region
      %s15 = ssub.s32 16, 16
      %16 = vsyncadd [#allocation4], %s15
      %19 = dma.hbm_to_smem %s0, 16, [#allocation2], [#allocation4]
    $region5: #{tpu_custom_call.1} parent=1 // pred_fallthru
      _
    // Predicated region
    $region6: #{tpu_custom_call.1} parent=1 // pred_check
      _
    $region7: #{tpu_custom_call.1} parent=1 // pred_check_branch
      %21 = sbr.rel (0) target = $region9
    $region8: #{tpu_custom_call.1} parent=1 // pred_region
      %s23 = ssub.s32 512, 512
      %24 = vsyncadd [#allocation3], %s23
      %s25 = sshll.u32 [#allocation6], 4
      %s26 = int_to_ptr.vmem [resolvable:$true] %s25
      %31 = dma.hbm_to_vmem [thread:$0]  %s1, 512, %s26, [#allocation3], 128, 128, 8
    $region9: #{tpu_custom_call.1} parent=1 // pred_fallthru
      _
    // Predicated region
    $region10: #{tpu_custom_call.1} parent=1 // pred_check
      _
    $region11: #{tpu_custom_call.1} parent=1 // pred_check_branch
      %33 = sbr.rel (0) target = $region13
    $region12: #{tpu_custom_call.1} parent=1 // pred_region
      %s35 = ssub.s32 512, 512
      %36 = vsyncadd [#allocation8], %s35
      %s37 = sshll.u32 [#allocation7], 4
      %s38 = int_to_ptr.vmem [resolvable:$true] %s37
      %43 = dma.hbm_to_vmem [thread:$0]  %s2, 512, %s38, [#allocation8], 128, 128, 8
    $region13: #{tpu_custom_call.1} parent=1 // pred_fallthru
      _
    // Predicated region
    $region14: #{tpu_custom_call.1} parent=1 // pred_check
      _
    $region15: #{tpu_custom_call.1} parent=1 // pred_check_branch
      %45 = sbr.rel (0) target = $region17
    $region16: #{tpu_custom_call.1} parent=1 // pred_region
      %46 = dma.done [#allocation4], 16
    $region17: #{tpu_custom_call.1} parent=1 // pred_fallthru
      _
    // Predicated region
    $region18: #{tpu_custom_call.1} parent=1 // pred_check
      _
    $region19: #{tpu_custom_call.1} parent=1 // pred_check_branch
      %48 = sbr.rel (0) target = $region21
    $region20: #{tpu_custom_call.1} parent=1 // pred_region
      %49 = dma.done [#allocation3], 512
    $region21: #{tpu_custom_call.1} parent=1 // pred_fallthru
      _
    // Predicated region
    $region22: #{tpu_custom_call.1} parent=1 // pred_check
      _
    $region23: #{tpu_custom_call.1} parent=1 // pred_check_branch
      %51 = sbr.rel (0) target = $region25
    $region24: #{tpu_custom_call.1} parent=1 // pred_region
      %52 = dma.done [#allocation8], 512
    $region25: #{tpu_custom_call.1} parent=1 // pred_fallthru
      _
    %53 = sfence
    %v54 = vld [vmem:[#allocation7] sm:$0xff]
    %v55 = vld [vmem:[#allocation7 + $0x8] sm:$0xff]
    %v56 = vld [vmem:[#allocation7 + $0x10] sm:$0xff]
    %v57 = vld [vmem:[#allocation7 + $0x18] sm:$0xff]
    %v58 = vld [vmem:[#allocation6] sm:$0xff]
    %v59 = vld [vmem:[#allocation6 + $0x8] sm:$0xff]
    %v60 = vld [vmem:[#allocation6 + $0x10] sm:$0xff]
    %v61 = vld [vmem:[#allocation6 + $0x18] sm:$0xff]
    %v62 = vsub.f32 %v54, %v58
    %v63 = vsub.f32 %v55, %v59
    %v64 = vsub.f32 %v56, %v60
    %v65 = vsub.f32 %v57, %v61
    %v66 = vadd.f32 %v62, 1e-06
    %v67 = vadd.f32 %v63, 1e-06
    %v68 = vadd.f32 %v64, 1e-06
    %v69 = vadd.f32 %v65, 1e-06
    %v70 = vmul.f32 %v66, %v66
    %v71 = vmul.f32 %v67, %v67
    %v72 = vmul.f32 %v68, %v68
    %v73 = vmul.f32 %v69, %v69
    %v74 = vadd.f32 %v70, %v71
    %v75 = vadd.f32 %v74, %v72
    %v76 = vadd.f32 %v75, %v73
    %v77 = vrot.slane %v76, 4
    %v78 = vadd.f32 %v76, %v77
    %v79 = vrot.slane %v78, 2
    %v80 = vadd.f32 %v78, %v79
    %v81 = vrot.slane %v80, 1
    %v82 = vadd.f32 %v80, %v81
    %v83 = vrsqrt.pop %v82
    %v84 = vmul.f32 %v82, %v83
    %vm85 = vcmp.eq.f32.partialorder %v82, inf
    %v86 = vsel %vm85, %v82, %v84
    %vm87 = vcmp.eq.f32.partialorder %v82, 0.0
    %v88 = vand.u32 %v82, 2147483648
    %v89 = vsel %vm87, %v88, %v86
    %v90 = vlaneseq
    %v91 = vand.u32 %v90, 127
    %s92 = sld [smem:[#allocation2]]
    %v93 = vstv %s92
    %vm94 = vcmp.eq.s32.totalorder %v91, %v93
    %s95 = sld [smem:[#allocation2 + $0x1]]
    %s96 = sadd.s32 %s95, 16
    %v97 = vstv %s96
    %vm98 = vcmp.eq.s32.totalorder %v91, %v97
    %s99 = sld [smem:[#allocation2 + $0x2]]
    %s100 = sadd.s32 %s99, 32
    %v101 = vstv %s100
    %vm102 = vcmp.eq.s32.totalorder %v91, %v101
    %s103 = sld [smem:[#allocation2 + $0x3]]
    %s104 = sadd.s32 %s103, 48
    %v105 = vstv %s104
    %vm106 = vcmp.eq.s32.totalorder %v91, %v105
    %s107 = sld [smem:[#allocation2 + $0x4]]
    %s108 = sadd.s32 %s107, 64
    %v109 = vstv %s108
    %vm110 = vcmp.eq.s32.totalorder %v91, %v109
    %s111 = sld [smem:[#allocation2 + $0x5]]
    %s112 = sadd.s32 %s111, 80
    %v113 = vstv %s112
    %vm114 = vcmp.eq.s32.totalorder %v91, %v113
    %s115 = sld [smem:[#allocation2 + $0x6]]
    %s116 = sadd.s32 %s115, 96
    %v117 = vstv %s116
    %vm118 = vcmp.eq.s32.totalorder %v91, %v117
    %s119 = sld [smem:[#allocation2 + $0x7]]
    %s120 = sadd.s32 %s119, 112
    %v121 = vstv %s120
    %vm122 = vcmp.eq.s32.totalorder %v91, %v121
    %vm123 = vmor %vm94, %vm98
    %vm124 = vmor %vm102, %vm106
    %vm125 = vmor %vm110, %vm114
    %vm126 = vmor %vm118, %vm122
    %vm127 = vmor %vm123, %vm124
    %vm128 = vmor %vm125, %vm126
    %vm129 = vmor %vm127, %vm128
    %v130 = vsel %vm129, %v89, 0.0
    %vm131 = vcmask 1040384
    %v132 = vsel %vm131, %v130, %v89
    %133 = vrot.lane.b32.xlu0 %v132, 16
    %v134 = vpop.permute.xlu0 %133
    %v135 = vmax.f32 %v132, %v134
    %136 = vrot.lane.b32.xlu0 %v135, 32
    %v137 = vpop.permute.xlu0 %136
    %v138 = vmax.f32 %v135, %v137
    %139 = vrot.lane.b32.xlu0 %v138, 64
    %v140 = vpop.permute.xlu0 %139
    %v141 = vmax.f32 %v138, %v140
    %v142 = vsel %vm129, %v141, 0.0
    %v143 = vadd.f32 %v89, %v142
    %v145 = vrot.slane %v143, 1
    %147 = vrot.lane.b32.xlu0 %v145, 16
    %v148 = vpop.permute.xlu0 %147
    %v150 = vrot.slane %v148, 7
    %v152 = vmin.f32 %v143, %v150
    %v154 = vrot.slane %v152, 1
    %156 = vrot.lane.b32.xlu0 %v154, 32
    %v157 = vpop.permute.xlu0 %156
    %v159 = vrot.slane %v157, 7
    %v161 = vmin.f32 %v152, %v159
    %v163 = vrot.slane %v161, 1
    %165 = vrot.lane.b32.xlu0 %v163, 64
    %v166 = vpop.permute.xlu0 %165
    %v168 = vrot.slane %v166, 7
    %v170 = vmin.f32 %v161, %v168
    %v172 = vrot.slane %v170, 1
    %v174 = vsub.f32 %v141, %v172
    %v175 = vadd.f32 %v174, 1.0
    %v176 = vmax.f32 %v175, 0.0
    %vm177 = vcmp.lt.s32.totalorder %v91, 16
    %v178 = vsel %vm177, %v176, 0.0
    %vm179 = vcmp.gt.f32.partialorder %v176, 1e-16
    %vm180 = vmand %vm177, %vm179
    %v181 = vsel %vm180, 1.0, 0.0
    %v183 = vrot.slane %v181, 7
    %v185 = vsel %vm131, %v178, %v183
    %vm186 = vcmask 1041408
    %v187 = vsel %vm186, %v185, 0.0
    %188 = vadd.xlane.f32.xlu0 %v187
    %v189 = vpop.xlane.xlu0 %188
    %s190 = vtos %v189
    %v191 = vrot.slane %v189, 1
    %s192 = vtos %v191
    %s193 = sadd.f32 %s192, 1e-16
    %v194 = vstv %s193
    %v195 = vrcp.pop %v194
    %s196 = vtos %v195
    %s197 = smul.f32 %s190, %s196
    %s198 = scalar_lea.smem [#allocation9], 0
    %199 = sst [smem:[%s198]] %s197
    // Predicated region
    $region26: #{tpu_custom_call.1} parent=1 // pred_check
      _
    $region27: #{tpu_custom_call.1} parent=1 // pred_check_branch
      %201 = sbr.rel (0) target = $region29
    $region28: #{tpu_custom_call.1} parent=1 // pred_region
      %s203 = ssub.s32 16, 16
      %204 = vsyncadd [#allocation5], %s203
      %207 = dma.smem_to_hbm [#allocation9], 16, %s3, [#allocation5]
    $region29: #{tpu_custom_call.1} parent=1 // pred_fallthru
      _
    // Predicated region
    $region30: #{tpu_custom_call.1} parent=1 // pred_check
      _
    $region31: #{tpu_custom_call.1} parent=1 // pred_check_branch
      %209 = sbr.rel (0) target = $region33
    $region32: #{tpu_custom_call.1} parent=1 // pred_region
      %210 = dma.done [#allocation5], 16
    $region33: #{tpu_custom_call.1} parent=1 // pred_fallthru
      _
    %211 = sfence
    %212 = vsyncpa [#allocation3], 1
    %213 = vsyncpa [#allocation8], 1
    %214 = vsyncpa [#allocation4], 1
    %215 = vsyncpa [#allocation5], 1

</llo_original>
